<compile_context>
chip_gen: v7x
topology: tpu7x:2x2x1
jax: 0.10.0
libtpu: 0.0.40
codegen_flags: <defaults>
</compile_context>

<pallas_src>
import functools
import math

import jax
import jax.numpy as jnp
from jax.experimental import pallas as pl
from jax.experimental.pallas import tpu as pltpu


def cross_attention_kernel(q_in_ref, v_in_ref, mask_ref,
                           wq_ref, bq_ref, wk_ref, bk_ref, wv_ref, bv_ref,
                           o_ref, *, head_num, head_size):
    # ---- Q/K/V projections: bf16 operands into the MXU, f32 accumulation ----
    xq = q_in_ref[...].astype(jnp.bfloat16)            # (Lq, in_dim)
    xv = v_in_ref[...].astype(jnp.bfloat16)            # (Lv, in_dim)

    q = jnp.dot(xq, wq_ref[...], preferred_element_type=jnp.float32) + bq_ref[...]
    k = jnp.dot(xv, wk_ref[...], preferred_element_type=jnp.float32) + bk_ref[...]
    v = jnp.dot(xv, wv_ref[...], preferred_element_type=jnp.float32) + bv_ref[...]

    # (1, Lv) additive mask, kept in f32 (implicit row broadcast in the add).
    neg_mask = mask_ref[...] * jnp.float32(-1e15)
    scale = jnp.float32(1.0 / math.sqrt(head_size))

    # Contract the trailing dim of both operands: Q (Lq,hs) x K (Lv,hs) -> (Lq,Lv)
    # without materializing an explicit transpose.
    contract_last = (((1,), (1,)), ((), ()))

    for h in range(head_num):                           # static unrolled head loop
        sl = slice(h * head_size, (h + 1) * head_size)
        qh = q[:, sl].astype(jnp.bfloat16)              # (Lq, hs)
        kh = k[:, sl].astype(jnp.bfloat16)              # (Lv, hs)
        vh = v[:, sl].astype(jnp.bfloat16)              # (Lv, hs)

        s = jax.lax.dot_general(qh, kh, contract_last,
                                preferred_element_type=jnp.float32)   # (Lq, Lv)
        s = s * scale + neg_mask

        # numerically-stable softmax (f32); reciprocal on the EUP.
        s_max = jnp.max(s, axis=-1, keepdims=True)
        e = jnp.exp(s - s_max)
        denom = jnp.sum(e, axis=-1, keepdims=True)
        att = e * pl.reciprocal(denom, approx=True)

        out_h = jnp.dot(att.astype(jnp.bfloat16), vh,
                        preferred_element_type=jnp.float32)           # (Lq, hs)
        o_ref[:, sl] = out_h.astype(o_ref.dtype)


def cross_attention(query_input, value_input, v_mask,
                    wq, bq, wk, bk, wv, bv, *, head_num=1):
    """query_input: (B, Lq, in_dim); value_input: (B, Lv, in_dim); v_mask: (B, Lv)
    wq/wk/wv: (in_dim, out_dim); bq/bk/bv: (out_dim,) -> (B, Lq, out_dim)."""
    B, Lq, in_dim = query_input.shape
    _, Lv, _ = value_input.shape
    out_dim = wq.shape[1]
    assert out_dim % head_num == 0
    head_size = out_dim // head_num

    # bf16 weights: half the DMA bytes / VMEM residency, native MXU rate.
    wq_b = wq.astype(jnp.bfloat16)
    wk_b = wk.astype(jnp.bfloat16)
    wv_b = wv.astype(jnp.bfloat16)
    bq2 = bq.reshape(1, out_dim).astype(jnp.float32)
    bk2 = bk.reshape(1, out_dim).astype(jnp.float32)
    bv2 = bv.reshape(1, out_dim).astype(jnp.float32)
    mask3 = v_mask.reshape(B, 1, Lv).astype(jnp.float32)

    kernel = functools.partial(cross_attention_kernel,
                               head_num=head_num, head_size=head_size)

    flops = B * (2 * Lq * in_dim * out_dim          # Q projection
                 + 4 * Lv * in_dim * out_dim        # K, V projections
                 + 4 * Lq * Lv * out_dim)           # QK^T and att@V
    transcendentals = B * head_num * Lq * (Lv + 1)  # exp + reciprocal
    bytes_accessed = int(
        query_input.size * 4 + value_input.size * 4 + mask3.size * 4
        + (wq_b.size + wk_b.size + wv_b.size) * 2
        + (bq2.size + bk2.size + bv2.size) * 4
        + B * Lq * out_dim * 4)

    return pl.pallas_call(
        kernel,
        out_shape=jax.ShapeDtypeStruct((B, Lq, out_dim), query_input.dtype),
        grid_spec=pltpu.PrefetchScalarGridSpec(
            num_scalar_prefetch=0,
            grid=(B,),
            in_specs=[
                pl.BlockSpec((None, Lq, in_dim), lambda b: (b, 0, 0)),   # query_input
                pl.BlockSpec((None, Lv, in_dim), lambda b: (b, 0, 0)),   # value_input
                pl.BlockSpec((None, 1, Lv), lambda b: (b, 0, 0)),        # v_mask
                pl.BlockSpec((in_dim, out_dim), lambda b: (0, 0)),       # Wq (resident)
                pl.BlockSpec((1, out_dim), lambda b: (0, 0)),            # bq
                pl.BlockSpec((in_dim, out_dim), lambda b: (0, 0)),       # Wk
                pl.BlockSpec((1, out_dim), lambda b: (0, 0)),            # bk
                pl.BlockSpec((in_dim, out_dim), lambda b: (0, 0)),       # Wv
                pl.BlockSpec((1, out_dim), lambda b: (0, 0)),            # bv
            ],
            out_specs=pl.BlockSpec((None, Lq, out_dim), lambda b: (b, 0, 0)),
        ),
        compiler_params=pltpu.CompilerParams(
            dimension_semantics=("parallel",),      # shard batch across TCs (v7x)
        ),
        cost_estimate=pl.CostEstimate(
            flops=flops,
            transcendentals=transcendentals,
            bytes_accessed=bytes_accessed,
        ),
    )(query_input, value_input, mask3, wq_b, bq2, wk_b, bk2, wv_b, bv2)


if __name__ == "__main__":
    # Small demo shapes consistent with the module; out_dim=128 keeps the
    # output / intermediates lane-dense.
    B, Lq, Lv = 2, 16, 32
    in_dim, out_dim, head_num = 32, 128, 1
    head_size = out_dim // head_num

    key = jax.random.PRNGKey(0)
    kq, kv, kwq, kbq, kwk, kbk, kwv, kbv = jax.random.split(key, 8)

    bound = 1.0 / math.sqrt(in_dim)
    query_input = jax.random.normal(kq, (B, Lq, in_dim), dtype=jnp.float32)
    value_input = jax.random.normal(kv, (B, Lv, in_dim), dtype=jnp.float32)
    wq = jax.random.uniform(kwq, (in_dim, out_dim), jnp.float32, -bound, bound)
    bq = jax.random.uniform(kbq, (out_dim,), jnp.float32, -bound, bound)
    wk = jax.random.uniform(kwk, (in_dim, out_dim), jnp.float32, -bound, bound)
    bk = jax.random.uniform(kbk, (out_dim,), jnp.float32, -bound, bound)
    wv = jax.random.uniform(kwv, (in_dim, out_dim), jnp.float32, -bound, bound)
    bv = jax.random.uniform(kbv, (out_dim,), jnp.float32, -bound, bound)

    # v_mask == 1 on padded key positions (matches score + v_mask * -1e15).
    valid_len = jnp.array([24, 20])
    v_mask = (jnp.arange(Lv)[None, :] >= valid_len[:, None]).astype(jnp.float32)

    out = cross_attention(query_input, value_input, v_mask,
                          wq, bq, wk, bk, wv, bv, head_num=head_num)
    jax.block_until_ready(out)

    # Pure-JAX f32 reference of the PyTorch forward.
    Q = query_input @ wq + bq
    K = value_input @ wk + bk
    V = value_input @ wv + bv
    Qh = Q.reshape(B, Lq, head_num, head_size).transpose(0, 2, 1, 3)
    Kh = K.reshape(B, Lv, head_num, head_size).transpose(0, 2, 1, 3)
    Vh = V.reshape(B, Lv, head_num, head_size).transpose(0, 2, 1, 3)
    s = jnp.einsum("bhqd,bhkd->bhqk", Qh, Kh) / jnp.sqrt(jnp.float32(head_size))
    s = s + v_mask[:, None, None, :] * jnp.float32(-1e15)
    att = jax.nn.softmax(s, axis=-1)
    ref = jnp.einsum("bhqk,bhkd->bhqd", att, Vh)
    ref = ref.transpose(0, 2, 1, 3).reshape(B, Lq, out_dim)

    # bf16 MXU feeds with f32 accumulation -> loosen tolerance slightly vs pure f32.
    assert jnp.allclose(out, ref, atol=3e-2, rtol=3e-2), float(jnp.max(jnp.abs(out - ref)))
    print("KERNEL_OK")
</pallas_src>

<mosaic_0001>
module attributes {stable_mosaic.version = 11 : i64} {
  func.func @cross_attention_kernel(%arg0: i32, %arg1: memref<1x16x32xf32, #tpu.memory_space<vmem>>, %arg2: memref<1x32x32xf32, #tpu.memory_space<vmem>>, %arg3: memref<1x1x32xf32, #tpu.memory_space<vmem>>, %arg4: memref<32x128xbf16, #tpu.memory_space<vmem>>, %arg5: memref<1x128xf32, #tpu.memory_space<vmem>>, %arg6: memref<32x128xbf16, #tpu.memory_space<vmem>>, %arg7: memref<1x128xf32, #tpu.memory_space<vmem>>, %arg8: memref<32x128xbf16, #tpu.memory_space<vmem>>, %arg9: memref<1x128xf32, #tpu.memory_space<vmem>>, %arg10: memref<1x16x128xf32, #tpu.memory_space<vmem>>) attributes {dimension_semantics = [#tpu.dimension_semantics<parallel>], iteration_bounds = array<i64: 2>, scalar_prefetch = 0 : i64, scratch_operands = 0 : i64, tpu.core_type = #tpu.core_type<tc>, window_params = [{transform_indices = @transform_0, window_bounds = array<i64: 1, 16, 32>}, {transform_indices = @transform_1, window_bounds = array<i64: 1, 32, 32>}, {transform_indices = @transform_2, window_bounds = array<i64: 1, 1, 32>}, {pipeline_mode = #tpu.pipeline_mode<synchronous>, transform_indices = @transform_3, window_bounds = array<i64: 32, 128>}, {pipeline_mode = #tpu.pipeline_mode<synchronous>, transform_indices = @transform_4, window_bounds = array<i64: 1, 128>}, {pipeline_mode = #tpu.pipeline_mode<synchronous>, transform_indices = @transform_5, window_bounds = array<i64: 32, 128>}, {pipeline_mode = #tpu.pipeline_mode<synchronous>, transform_indices = @transform_6, window_bounds = array<i64: 1, 128>}, {pipeline_mode = #tpu.pipeline_mode<synchronous>, transform_indices = @transform_7, window_bounds = array<i64: 32, 128>}, {pipeline_mode = #tpu.pipeline_mode<synchronous>, transform_indices = @transform_8, window_bounds = array<i64: 1, 128>}, {transform_indices = @transform_9, window_bounds = array<i64: 1, 16, 128>}]} {
    %c0 = arith.constant 0 : index
    %c0_0 = arith.constant 0 : index
    %c0_1 = arith.constant 0 : index
    %0 = vector.load %arg1[%c0, %c0_0, %c0_1] : memref<1x16x32xf32, #tpu.memory_space<vmem>>, vector<1x16x32xf32>
    %1 = vector.shape_cast %0 : vector<1x16x32xf32> to vector<16x32xf32>
    %2 = arith.truncf %1 : vector<16x32xf32> to vector<16x32xbf16>
    %c0_2 = arith.constant 0 : index
    %c0_3 = arith.constant 0 : index
    %c0_4 = arith.constant 0 : index
    %3 = vector.load %arg2[%c0_2, %c0_3, %c0_4] : memref<1x32x32xf32, #tpu.memory_space<vmem>>, vector<1x32x32xf32>
    %4 = vector.shape_cast %3 : vector<1x32x32xf32> to vector<32x32xf32>
    %5 = arith.truncf %4 : vector<32x32xf32> to vector<32x32xbf16>
    %c0_5 = arith.constant 0 : index
    %c0_6 = arith.constant 0 : index
    %6 = vector.load %arg4[%c0_5, %c0_6] : memref<32x128xbf16, #tpu.memory_space<vmem>>, vector<32x128xbf16>
    %cst = arith.constant dense<0.000000e+00> : vector<16x128xf32>
    %7 = tpu.matmul %2, %6, %cst {dimension_numbers = #tpu.dot_dimension_numbers<[1], [0], [0], [1], [0, 0, 1, 1], [], []>} : vector<16x32xbf16>, vector<32x128xbf16>, vector<16x128xf32> -> vector<16x128xf32>
    %c0_7 = arith.constant 0 : index
    %c0_8 = arith.constant 0 : index
    %8 = vector.load %arg5[%c0_7, %c0_8] : memref<1x128xf32, #tpu.memory_space<vmem>>, vector<1x128xf32>
    %9 = vector.broadcast %8 : vector<1x128xf32> to vector<16x128xf32>
    %10 = arith.addf %7, %9 : vector<16x128xf32>
    %c0_9 = arith.constant 0 : index
    %c0_10 = arith.constant 0 : index
    %11 = vector.load %arg6[%c0_9, %c0_10] : memref<32x128xbf16, #tpu.memory_space<vmem>>, vector<32x128xbf16>
    %cst_11 = arith.constant dense<0.000000e+00> : vector<32x128xf32>
    %12 = tpu.matmul %5, %11, %cst_11 {dimension_numbers = #tpu.dot_dimension_numbers<[1], [0], [0], [1], [0, 0, 1, 1], [], []>} : vector<32x32xbf16>, vector<32x128xbf16>, vector<32x128xf32> -> vector<32x128xf32>
    %c0_12 = arith.constant 0 : index
    %c0_13 = arith.constant 0 : index
    %13 = vector.load %arg7[%c0_12, %c0_13] : memref<1x128xf32, #tpu.memory_space<vmem>>, vector<1x128xf32>
    %14 = vector.broadcast %13 : vector<1x128xf32> to vector<32x128xf32>
    %15 = arith.addf %12, %14 : vector<32x128xf32>
    %c0_14 = arith.constant 0 : index
    %c0_15 = arith.constant 0 : index
    %16 = vector.load %arg8[%c0_14, %c0_15] : memref<32x128xbf16, #tpu.memory_space<vmem>>, vector<32x128xbf16>
    %cst_16 = arith.constant dense<0.000000e+00> : vector<32x128xf32>
    %17 = tpu.matmul %5, %16, %cst_16 {dimension_numbers = #tpu.dot_dimension_numbers<[1], [0], [0], [1], [0, 0, 1, 1], [], []>} : vector<32x32xbf16>, vector<32x128xbf16>, vector<32x128xf32> -> vector<32x128xf32>
    %c0_17 = arith.constant 0 : index
    %c0_18 = arith.constant 0 : index
    %18 = vector.load %arg9[%c0_17, %c0_18] : memref<1x128xf32, #tpu.memory_space<vmem>>, vector<1x128xf32>
    %19 = vector.broadcast %18 : vector<1x128xf32> to vector<32x128xf32>
    %20 = arith.addf %17, %19 : vector<32x128xf32>
    %c0_19 = arith.constant 0 : index
    %c0_20 = arith.constant 0 : index
    %c0_21 = arith.constant 0 : index
    %21 = vector.load %arg3[%c0_19, %c0_20, %c0_21] : memref<1x1x32xf32, #tpu.memory_space<vmem>>, vector<1x1x32xf32>
    %22 = vector.shape_cast %21 : vector<1x1x32xf32> to vector<1x32xf32>
    %cst_22 = arith.constant -9.99999986E+14 : f32
    %23 = vector.broadcast %cst_22 : f32 to vector<1x32xf32>
    %24 = arith.mulf %22, %23 : vector<1x32xf32>
    %25 = arith.truncf %10 : vector<16x128xf32> to vector<16x128xbf16>
    %26 = arith.truncf %15 : vector<32x128xf32> to vector<32x128xbf16>
    %27 = arith.truncf %20 : vector<32x128xf32> to vector<32x128xbf16>
    %cst_23 = arith.constant dense<0.000000e+00> : vector<16x32xf32>
    %28 = tpu.matmul %25, %26, %cst_23 {dimension_numbers = #tpu.dot_dimension_numbers<[1], [1], [0], [0], [0, 0, 1, 0], [], []>} : vector<16x128xbf16>, vector<32x128xbf16>, vector<16x32xf32> -> vector<16x32xf32>
    %cst_24 = arith.constant 0.0883883461 : f32
    %29 = vector.broadcast %cst_24 : f32 to vector<16x32xf32>
    %30 = arith.mulf %28, %29 : vector<16x32xf32>
    %31 = vector.broadcast %24 : vector<1x32xf32> to vector<16x32xf32>
    %32 = arith.addf %30, %31 : vector<16x32xf32>
    %cst_25 = arith.constant dense<0xFF800000> : vector<16xf32>
    %33 = vector.multi_reduction <maximumf>, %32, %cst_25 [1] : vector<16x32xf32> to vector<16xf32>
    %34 = vector.shape_cast %33 : vector<16xf32> to vector<16x1xf32>
    %35 = vector.broadcast %34 : vector<16x1xf32> to vector<16x32xf32>
    %36 = arith.subf %32, %35 : vector<16x32xf32>
    %37 = math.exp %36 : vector<16x32xf32>
    %cst_26 = arith.constant dense<0.000000e+00> : vector<16xf32>
    %38 = vector.multi_reduction <add>, %37, %cst_26 [1] : vector<16x32xf32> to vector<16xf32>
    %39 = vector.shape_cast %38 : vector<16xf32> to vector<16x1xf32>
    %40 = tpu.reciprocal %39 {approx = true} : vector<16x1xf32> -> vector<16x1xf32>
    %41 = vector.broadcast %40 : vector<16x1xf32> to vector<16x32xf32>
    %42 = arith.mulf %37, %41 : vector<16x32xf32>
    %43 = arith.truncf %42 : vector<16x32xf32> to vector<16x32xbf16>
    %cst_27 = arith.constant dense<0.000000e+00> : vector<16x128xf32>
    %44 = tpu.matmul %43, %27, %cst_27 {dimension_numbers = #tpu.dot_dimension_numbers<[1], [0], [0], [1], [0, 0, 1, 1], [], []>} : vector<16x32xbf16>, vector<32x128xbf16>, vector<16x128xf32> -> vector<16x128xf32>
    %c0_28 = arith.constant 0 : index
    %c0_29 = arith.constant 0 : index
    %c0_30 = arith.constant 0 : index
    %45 = vector.load %arg10[%c0_28, %c0_29, %c0_30] : memref<1x16x128xf32, #tpu.memory_space<vmem>>, vector<1x16x128xf32>
    %46 = vector.shape_cast %45 : vector<1x16x128xf32> to vector<16x128xf32>
    %47 = vector.shape_cast %44 : vector<16x128xf32> to vector<1x16x128xf32>
    tpu.vector_store %arg10[%c0_28, %c0_29, %c0_30], %47 {strides = array<i32>} : memref<1x16x128xf32, #tpu.memory_space<vmem>>, vector<1x16x128xf32>,
    return
  }
  func.func @transform_0(%arg0: i32) -> (i32, i32, i32) {
    %c0_i32 = arith.constant 0 : i32
    %c0_i32_0 = arith.constant 0 : i32
    %c0_i32_1 = arith.constant 0 : i32
    return %arg0, %c0_i32, %c0_i32_0 : i32, i32, i32
  }
  func.func @transform_1(%arg0: i32) -> (i32, i32, i32) {
    %c0_i32 = arith.constant 0 : i32
    %c0_i32_0 = arith.constant 0 : i32
    %c0_i32_1 = arith.constant 0 : i32
    return %arg0, %c0_i32, %c0_i32_0 : i32, i32, i32
  }
  func.func @transform_2(%arg0: i32) -> (i32, i32, i32) {
    %c0_i32 = arith.constant 0 : i32
    %c0_i32_0 = arith.constant 0 : i32
    %c0_i32_1 = arith.constant 0 : i32
    return %arg0, %c0_i32, %c0_i32_0 : i32, i32, i32
  }
  func.func @transform_3(%arg0: i32) -> (i32, i32) {
    %c0_i32 = arith.constant 0 : i32
    %c0_i32_0 = arith.constant 0 : i32
    %c0_i32_1 = arith.constant 0 : i32
    return %c0_i32, %c0_i32_0 : i32, i32
  }
  func.func @transform_4(%arg0: i32) -> (i32, i32) {
    %c0_i32 = arith.constant 0 : i32
    %c0_i32_0 = arith.constant 0 : i32
    %c0_i32_1 = arith.constant 0 : i32
    return %c0_i32, %c0_i32_0 : i32, i32
  }
  func.func @transform_5(%arg0: i32) -> (i32, i32) {
    %c0_i32 = arith.constant 0 : i32
    %c0_i32_0 = arith.constant 0 : i32
    %c0_i32_1 = arith.constant 0 : i32
    return %c0_i32, %c0_i32_0 : i32, i32
  }
  func.func @transform_6(%arg0: i32) -> (i32, i32) {
    %c0_i32 = arith.constant 0 : i32
    %c0_i32_0 = arith.constant 0 : i32
    %c0_i32_1 = arith.constant 0 : i32
    return %c0_i32, %c0_i32_0 : i32, i32
  }
  func.func @transform_7(%arg0: i32) -> (i32, i32) {
    %c0_i32 = arith.constant 0 : i32
    %c0_i32_0 = arith.constant 0 : i32
    %c0_i32_1 = arith.constant 0 : i32
    return %c0_i32, %c0_i32_0 : i32, i32
  }
  func.func @transform_8(%arg0: i32) -> (i32, i32) {
    %c0_i32 = arith.constant 0 : i32
    %c0_i32_0 = arith.constant 0 : i32
    %c0_i32_1 = arith.constant 0 : i32
    return %c0_i32, %c0_i32_0 : i32, i32
  }
  func.func @transform_9(%arg0: i32) -> (i32, i32, i32) {
    %c0_i32 = arith.constant 0 : i32
    %c0_i32_0 = arith.constant 0 : i32
    %c0_i32_1 = arith.constant 0 : i32
    return %arg0, %c0_i32, %c0_i32_0 : i32, i32, i32
  }
}

</mosaic_0001>

<llo_original>
// kernel: tpu_custom_call.1
$region0: #{tpu_custom_call.1}
  #allocation0 [shape = 'u32[]', space=smem, size = 0x4, offset = 0x4, fixed_abs, tag = 'smem constant byte address 0x4 - core index']
  #allocation1 [shape = 'u32[144,128]{1,0:T(1,128)}', space=vmem, size = 0x12000, scoped, tag = 'internal scratch']
  %s0 = inlined_call_operand.hbm [shape: f32[2,16,32], index: 0, kind: input, shape index: {}]
  %s1 = inlined_call_operand.hbm [shape: f32[2,32,32], index: 1, kind: input, shape index: {}]
  %s2 = inlined_call_operand.vmem [shape: f32[2,1,32], index: 2, kind: input, shape index: {}]
  %s3 = inlined_call_operand.hbm [shape: bf16[32,128], index: 3, kind: input, shape index: {}]
  %s4 = inlined_call_operand.hbm [shape: f32[1,128], index: 4, kind: input, shape index: {}]
  %s5 = inlined_call_operand.vmem [shape: bf16[32,128], index: 5, kind: input, shape index: {}]
  %s6 = inlined_call_operand.vmem [shape: f32[1,128], index: 6, kind: input, shape index: {}]
  %s7 = inlined_call_operand.hbm [shape: bf16[32,128], index: 7, kind: input, shape index: {}]
  %s8 = inlined_call_operand.vmem [shape: f32[1,128], index: 8, kind: input, shape index: {}]
  %s9 = inlined_call_operand.hbm [shape: f32[2,16,128], index: 9, kind: output, shape index: {}]
  %s10 = sld [smem:[#allocation0]]
  $region89: #{tpu_custom_call.1} parent=0
    _
  %s12 = ssub.s32 1, %s10
  %s13 = scalar_select 0, %s12, %s10
  $region1: #{tpu_custom_call.1} parent=0
    #allocation2 [shape = 'u8[16384]{0}', space=vmem, size = 0x4000, scoped, tag = 'input window, operand 0']
    #allocation3 [shape = 's32[2]{0}', space=sflag, size = 0x8, scoped, tag = 'scoped memory for tpu_custom_call.1']
    #allocation4 [shape = 's32[2]{0}', space=sflag, size = 0x8, scoped, tag = 'scoped memory for tpu_custom_call.1']
    #allocation5 [shape = 'u8[32768]{0}', space=vmem, size = 0x8000, scoped, tag = 'input window, operand 1']
    #allocation6 [shape = 's32[2]{0}', space=sflag, size = 0x8, scoped, tag = 'scoped memory for tpu_custom_call.1']
    #allocation7 [shape = 'u8[8192]{0}', space=vmem, size = 0x2000, scoped, tag = 'input window, operand 3, single buffered']
    #allocation8 [shape = 'u8[512]{0}', space=vmem, size = 0x400, scoped, tag = 'input window, operand 4, single buffered']
    #allocation9 [shape = 's32[1]{0}', space=sflag, size = 0x4, scoped, tag = 'scoped memory for tpu_custom_call.1']
    #allocation10 [shape = 'u8[8192]{0}', space=vmem, size = 0x2000, scoped, tag = 'input window, operand 7, single buffered']
    #allocation11 [shape = 'u8[16384]{0}', space=vmem, size = 0x4000, scoped, tag = 'output window, operand 0']
    %14 = vsyncpa [#allocation3], 0
    %s15 = scalar_lea.sflag [#allocation3], 1
    %16 = vsyncpa %s15, 0
    %17 = vsyncpa [#allocation6], 0
    %s18 = scalar_lea.sflag [#allocation6], 1
    %19 = vsyncpa %s18, 0
    %20 = vsyncpa [#allocation9], 0
    %21 = vsyncpa [#allocation4], 0
    %s22 = scalar_lea.sflag [#allocation4], 1
    %23 = vsyncpa %s22, 0
    loop: start=0, step=1, limit=4
    $region2: #{tpu_custom_call.1} parent=1 // loop_pre_header
      _
    $region3: #{tpu_custom_call.1} parent=1 // loop_header
      %s25 = sphi 0, %s29
      %p26 = scmp.ge.s32.totalorder %s25, 4
      %s35 = sphi 0, %s37
      %s38 = sphi 0, %s35
      %s39 = sphi 0, %s38
      %s55 = sphi 0, %s39
      %s61 = sphi 0, %s63
      %s64 = sphi 0, %s61
      %s65 = sphi 0, %s64
      %s81 = sphi 0, %s65
      %s87 = sphi 0, %s89
      %s90 = sphi 0, %s87
      %s91 = sphi 0, %s90
      %s107 = sphi 0, %s91
      %s111 = sphi 0, %s111
      %s113 = sphi 0, %s111
      %s114 = sphi 0, %s113
      %s128 = sphi 0, %s114
      %s132 = sphi 0, %s132
      %s134 = sphi 0, %s132
      %s135 = sphi 0, %s134
      %s149 = sphi 0, %s135
      %s153 = sphi 0, %s153
      %s155 = sphi 0, %s153
      %s156 = sphi 0, %s155
      %s170 = sphi 0, %s156
      %s174 = sphi 0, %s174
      %s176 = sphi 0, %s174
      %s177 = sphi 0, %s176
      %s191 = sphi 0, %s177
      %s195 = sphi 0, %s195
      %s197 = sphi 0, %s195
      %s198 = sphi 0, %s197
      %s212 = sphi 0, %s198
      %s216 = sphi 0, %s216
      %s218 = sphi 0, %s216
      %s219 = sphi 0, %s218
      %s233 = sphi 0, %s219
      %s239 = sphi 0, %s241
      %s242 = sphi 0, %s239
      %s243 = sphi 0, %s242
      %s259 = sphi 0, %s243
    $region4: #{tpu_custom_call.1} parent=1 // loop_header_branch
      %28 = sbr.rel (%p26) target = $region8
    $region5: #{tpu_custom_call.1} parent=1 // loop_body
      %s30 = ssub.s32 %s25, 1
      %s31 = ssub.s32 %s25, 2
      %s32 = sadd.s32 %s25, 1
      %s33 = ssub.s32 %s25, %s32
      %p34 = scmp.eq.s32.totalorder %s33, 0
      %s36 = sadd.s32 %s35, 1
      %s37 = scalar_select %p34, %s35, %s36
      %p40 = pneg %p34
      %p41 = scmp.eq.s32.totalorder %s25, 1
      %p42 = por %p40, %p41
      %p43 = scmp.ne.s32.totalorder %s35, %s38
      %p44 = scmp.eq.s32.totalorder %s25, 0
      %p45 = por %p43, %p44
      %p46 = scmp.ne.s32.totalorder %s35, %s38
      %p47 = scmp.eq.s32.totalorder %s30, 1
      %p48 = por %p46, %p47
      %p49 = scmp.ne.s32.totalorder %s38, %s39
      %p50 = scmp.eq.s32.totalorder %s30, 0
      %p51 = por %p49, %p50
      %p52 = scmp.ne.s32.totalorder %s38, %s39
      %p53 = scmp.eq.s32.totalorder %s31, 1
      %p54 = por %p52, %p53
      %p56 = scmp.ne.s32.totalorder %s39, %s55
      %p57 = scmp.eq.s32.totalorder %s31, 0
      %p58 = por %p56, %p57
      %s59 = ssub.s32 %s25, %s32
      %p60 = scmp.eq.s32.totalorder %s59, 0
      %s62 = sadd.s32 %s61, 1
      %s63 = scalar_select %p60, %s61, %s62
      %p66 = pneg %p60
      %p67 = scmp.eq.s32.totalorder %s25, 1
      %p68 = por %p66, %p67
      %p69 = scmp.ne.s32.totalorder %s61, %s64
      %p70 = scmp.eq.s32.totalorder %s25, 0
      %p71 = por %p69, %p70
      %p72 = scmp.ne.s32.totalorder %s61, %s64
      %p73 = scmp.eq.s32.totalorder %s30, 1
      %p74 = por %p72, %p73
      %p75 = scmp.ne.s32.totalorder %s64, %s65
      %p76 = scmp.eq.s32.totalorder %s30, 0
      %p77 = por %p75, %p76
      %p78 = scmp.ne.s32.totalorder %s64, %s65
      %p79 = scmp.eq.s32.totalorder %s31, 1
      %p80 = por %p78, %p79
      %p82 = scmp.ne.s32.totalorder %s65, %s81
      %p83 = scmp.eq.s32.totalorder %s31, 0
      %p84 = por %p82, %p83
      %s85 = ssub.s32 %s25, %s32
      %p86 = scmp.eq.s32.totalorder %s85, 0
      %s88 = sadd.s32 %s87, 1
      %s89 = scalar_select %p86, %s87, %s88
      %p92 = pneg %p86
      %p93 = scmp.eq.s32.totalorder %s25, 1
      %p94 = por %p92, %p93
      %p95 = scmp.ne.s32.totalorder %s87, %s90
      %p96 = scmp.eq.s32.totalorder %s25, 0
      %p97 = por %p95, %p96
      %p98 = scmp.ne.s32.totalorder %s87, %s90
      %p99 = scmp.eq.s32.totalorder %s30, 1
      %p100 = por %p98, %p99
      %p101 = scmp.ne.s32.totalorder %s90, %s91
      %p102 = scmp.eq.s32.totalorder %s30, 0
      %p103 = por %p101, %p102
      %p104 = scmp.ne.s32.totalorder %s90, %s91
      %p105 = scmp.eq.s32.totalorder %s31, 1
      %p106 = por %p104, %p105
      %p108 = scmp.ne.s32.totalorder %s91, %s107
      %p109 = scmp.eq.s32.totalorder %s31, 0
      %p110 = por %p108, %p109
      %s112 = sadd.s32 %s111, 1
      %p115 = scmp.eq.s32.totalorder %s25, 1
      %p116 = scmp.ne.s32.totalorder %s111, %s113
      %p117 = scmp.eq.s32.totalorder %s25, 0
      %p118 = por %p116, %p117
      %p119 = scmp.ne.s32.totalorder %s111, %s113
      %p120 = scmp.eq.s32.totalorder %s30, 1
      %p121 = por %p119, %p120
      %p122 = scmp.ne.s32.totalorder %s113, %s114
      %p123 = scmp.eq.s32.totalorder %s30, 0
      %p124 = por %p122, %p123
      %p125 = scmp.ne.s32.totalorder %s113, %s114
      %p126 = scmp.eq.s32.totalorder %s31, 1
      %p127 = por %p125, %p126
      %p129 = scmp.ne.s32.totalorder %s114, %s128
      %p130 = scmp.eq.s32.totalorder %s31, 0
      %p131 = por %p129, %p130
      %s133 = sadd.s32 %s132, 1
      %p136 = scmp.eq.s32.totalorder %s25, 1
      %p137 = scmp.ne.s32.totalorder %s132, %s134
      %p138 = scmp.eq.s32.totalorder %s25, 0
      %p139 = por %p137, %p138
      %p140 = scmp.ne.s32.totalorder %s132, %s134
      %p141 = scmp.eq.s32.totalorder %s30, 1
      %p142 = por %p140, %p141
      %p143 = scmp.ne.s32.totalorder %s134, %s135
      %p144 = scmp.eq.s32.totalorder %s30, 0
      %p145 = por %p143, %p144
      %p146 = scmp.ne.s32.totalorder %s134, %s135
      %p147 = scmp.eq.s32.totalorder %s31, 1
      %p148 = por %p146, %p147
      %p150 = scmp.ne.s32.totalorder %s135, %s149
      %p151 = scmp.eq.s32.totalorder %s31, 0
      %p152 = por %p150, %p151
      %s154 = sadd.s32 %s153, 1
      %p157 = scmp.eq.s32.totalorder %s25, 1
      %p158 = scmp.ne.s32.totalorder %s153, %s155
      %p159 = scmp.eq.s32.totalorder %s25, 0
      %p160 = por %p158, %p159
      %p161 = scmp.ne.s32.totalorder %s153, %s155
      %p162 = scmp.eq.s32.totalorder %s30, 1
      %p163 = por %p161, %p162
      %p164 = scmp.ne.s32.totalorder %s155, %s156
      %p165 = scmp.eq.s32.totalorder %s30, 0
      %p166 = por %p164, %p165
      %p167 = scmp.ne.s32.totalorder %s155, %s156
      %p168 = scmp.eq.s32.totalorder %s31, 1
      %p169 = por %p167, %p168
      %p171 = scmp.ne.s32.totalorder %s156, %s170
      %p172 = scmp.eq.s32.totalorder %s31, 0
      %p173 = por %p171, %p172
      %s175 = sadd.s32 %s174, 1
      %p178 = scmp.eq.s32.totalorder %s25, 1
      %p179 = scmp.ne.s32.totalorder %s174, %s176
      %p180 = scmp.eq.s32.totalorder %s25, 0
      %p181 = por %p179, %p180
      %p182 = scmp.ne.s32.totalorder %s174, %s176
      %p183 = scmp.eq.s32.totalorder %s30, 1
      %p184 = por %p182, %p183
      %p185 = scmp.ne.s32.totalorder %s176, %s177
      %p186 = scmp.eq.s32.totalorder %s30, 0
      %p187 = por %p185, %p186
      %p188 = scmp.ne.s32.totalorder %s176, %s177
      %p189 = scmp.eq.s32.totalorder %s31, 1
      %p190 = por %p188, %p189
      %p192 = scmp.ne.s32.totalorder %s177, %s191
      %p193 = scmp.eq.s32.totalorder %s31, 0
      %p194 = por %p192, %p193
      %s196 = sadd.s32 %s195, 1
      %p199 = scmp.eq.s32.totalorder %s25, 1
      %p200 = scmp.ne.s32.totalorder %s195, %s197
      %p201 = scmp.eq.s32.totalorder %s25, 0
      %p202 = por %p200, %p201
      %p203 = scmp.ne.s32.totalorder %s195, %s197
      %p204 = scmp.eq.s32.totalorder %s30, 1
      %p205 = por %p203, %p204
      %p206 = scmp.ne.s32.totalorder %s197, %s198
      %p207 = scmp.eq.s32.totalorder %s30, 0
      %p208 = por %p206, %p207
      %p209 = scmp.ne.s32.totalorder %s197, %s198
      %p210 = scmp.eq.s32.totalorder %s31, 1
      %p211 = por %p209, %p210
      %p213 = scmp.ne.s32.totalorder %s198, %s212
      %p214 = scmp.eq.s32.totalorder %s31, 0
      %p215 = por %p213, %p214
      %s217 = sadd.s32 %s216, 1
      %p220 = scmp.eq.s32.totalorder %s25, 1
      %p221 = scmp.ne.s32.totalorder %s216, %s218
      %p222 = scmp.eq.s32.totalorder %s25, 0
      %p223 = por %p221, %p222
      %p224 = scmp.ne.s32.totalorder %s216, %s218
      %p225 = scmp.eq.s32.totalorder %s30, 1
      %p226 = por %p224, %p225
      %p227 = scmp.ne.s32.totalorder %s218, %s219
      %p228 = scmp.eq.s32.totalorder %s30, 0
      %p229 = por %p227, %p228
      %p230 = scmp.ne.s32.totalorder %s218, %s219
      %p231 = scmp.eq.s32.totalorder %s31, 1
      %p232 = por %p230, %p231
      %p234 = scmp.ne.s32.totalorder %s219, %s233
      %p235 = scmp.eq.s32.totalorder %s31, 0
      %p236 = por %p234, %p235
      %s237 = ssub.s32 %s25, %s32
      %p238 = scmp.eq.s32.totalorder %s237, 0
      %s240 = sadd.s32 %s239, 1
      %s241 = scalar_select %p238, %s239, %s240
      %p244 = pneg %p238
      %p245 = scmp.eq.s32.totalorder %s25, 1
      %p246 = por %p244, %p245
      %p247 = scmp.ne.s32.totalorder %s239, %s242
      %p248 = scmp.eq.s32.totalorder %s25, 0
      %p249 = por %p247, %p248
      %p250 = scmp.ne.s32.totalorder %s239, %s242
      %p251 = scmp.eq.s32.totalorder %s30, 1
      %p252 = por %p250, %p251
      %p253 = scmp.ne.s32.totalorder %s242, %s243
      %p254 = scmp.eq.s32.totalorder %s30, 0
      %p255 = por %p253, %p254
      %p256 = scmp.ne.s32.totalorder %s242, %s243
      %p257 = scmp.eq.s32.totalorder %s31, 1
      %p258 = por %p256, %p257
      %p260 = scmp.ne.s32.totalorder %s243, %s259
      %p261 = scmp.eq.s32.totalorder %s31, 0
      %p262 = por %p260, %p261
      %p263 = scmp.le.s32.totalorder 1, %s25
      %p264 = scmp.lt.s32.totalorder %s25, 3
      %p265 = pnand %p263, %p264
      %p266 = pneg %p265
      // Predicated region
      $region9: #{tpu_custom_call.1} parent=5 // pred_check
        _
      $region10: #{tpu_custom_call.1} parent=5 // pred_check_branch
        %268 = sbr.rel (%p265) target = $region12
      $region11: #{tpu_custom_call.1} parent=5 // pred_region
        %s269 = ssub.s32 %s25, 1
        // Predicated region
        $region13: #{tpu_custom_call.1} parent=11 // pred_check
          %p270 = pneg %p124
        $region14: #{tpu_custom_call.1} parent=11 // pred_check_branch
          %272 = sbr.rel (%p270) target = $region16
        $region15: #{tpu_custom_call.1} parent=11 // pred_region
          %s274 = ssub.s32 256, 256
          %275 = vsyncadd [#allocation6], %s274
          %s276 = sshll.u32 [#allocation7], 4
          %s277 = int_to_ptr.vmem [resolvable:$true] %s276
          %282 = dma.hbm_to_vmem [thread:$0]  %s3, 256, %s277, [#allocation6], 64, 64, 4
        $region16: #{tpu_custom_call.1} parent=11 // pred_fallthru
          _
        // Predicated region
        $region17: #{tpu_custom_call.1} parent=11 // pred_check
          %p283 = pneg %p145
        $region18: #{tpu_custom_call.1} parent=11 // pred_check_branch
          %285 = sbr.rel (%p283) target = $region20
        $region19: #{tpu_custom_call.1} parent=11 // pred_region
          %s287 = ssub.s32 16, 16
          %288 = vsyncadd [#allocation9], %s287
          %s290 = sshll.u32 [#allocation8], 4
          %s291 = int_to_ptr.vmem [resolvable:$true] %s290
          %293 = dma.hbm_to_vmem [thread:$0]  %s4, 16, %s291, [#allocation9]
        $region20: #{tpu_custom_call.1} parent=11 // pred_fallthru
          _
        // Predicated region
        $region21: #{tpu_custom_call.1} parent=11 // pred_check
          %p294 = pneg %p166
        $region22: #{tpu_custom_call.1} parent=11 // pred_check_branch
          %296 = sbr.rel (%p294) target = $region24
        $region23: #{tpu_custom_call.1} parent=11 // pred_region
          _
        $region24: #{tpu_custom_call.1} parent=11 // pred_fallthru
          _
        // Predicated region
        $region25: #{tpu_custom_call.1} parent=11 // pred_check
          %p297 = pneg %p187
        $region26: #{tpu_custom_call.1} parent=11 // pred_check_branch
          %299 = sbr.rel (%p297) target = $region28
        $region27: #{tpu_custom_call.1} parent=11 // pred_region
          _
        $region28: #{tpu_custom_call.1} parent=11 // pred_fallthru
          _
        // Predicated region
        $region29: #{tpu_custom_call.1} parent=11 // pred_check
          %p300 = pneg %p208
        $region30: #{tpu_custom_call.1} parent=11 // pred_check_branch
          %302 = sbr.rel (%p300) target = $region32
        $region31: #{tpu_custom_call.1} parent=11 // pred_region
          %s304 = ssub.s32 256, 256
          %305 = vsyncadd [#allocation9], %s304
          %s306 = sshll.u32 [#allocation10], 4
          %s307 = int_to_ptr.vmem [resolvable:$true] %s306
          %312 = dma.hbm_to_vmem [thread:$0]  %s7, 256, %s307, [#allocation9], 64, 64, 4
        $region32: #{tpu_custom_call.1} parent=11 // pred_fallthru
          _
        // Predicated region
        $region33: #{tpu_custom_call.1} parent=11 // pred_check
          %p313 = pneg %p229
        $region34: #{tpu_custom_call.1} parent=11 // pred_check_branch
          %315 = sbr.rel (%p313) target = $region36
        $region35: #{tpu_custom_call.1} parent=11 // pred_region
          _
        $region36: #{tpu_custom_call.1} parent=11 // pred_fallthru
          _
      $region12: #{tpu_custom_call.1} parent=5 // pred_fallthru
        _
      %p316 = scmp.lt.s32.totalorder %s25, 2
      // Predicated region
      $region37: #{tpu_custom_call.1} parent=5 // pred_check
        %p317 = pneg %p316
      $region38: #{tpu_custom_call.1} parent=5 // pred_check_branch
        %319 = sbr.rel (%p317) target = $region40
      $region39: #{tpu_custom_call.1} parent=5 // pred_region
        // Predicated region
        $region41: #{tpu_custom_call.1} parent=39 // pred_check
          %p320 = pneg %p45
        $region42: #{tpu_custom_call.1} parent=39 // pred_check_branch
          %322 = sbr.rel (%p320) target = $region44
        $region43: #{tpu_custom_call.1} parent=39 // pred_region
          %s323 = sand.u32 %s35, 1
          %s324 = scalar_lea.sflag [#allocation3], %s323
          %s325 = sand.u32 %s35, 1
          %s326 = smul.addr %s325, 16
          %s327 = scalar_lea.vmem [#allocation2], %s326
          %s329 = ssub.s32 256, 256
          %330 = vsyncadd %s324, %s329
          %s331 = smul.addr %s25, 2
          %s332 = smul.addr %s331, 128
          %s333 = scalar_lea.hbm %s0, %s332
          %s334 = sshll.u32 %s327, 4
          %s335 = int_to_ptr.vmem [resolvable:$true] %s334
          %340 = dma.hbm_to_vmem [thread:$0]  %s333, 256, %s335, %s324, 128, 128, 8
        $region44: #{tpu_custom_call.1} parent=39 // pred_fallthru
          _
        // Predicated region
        $region45: #{tpu_custom_call.1} parent=39 // pred_check
          %p341 = pneg %p71
        $region46: #{tpu_custom_call.1} parent=39 // pred_check_branch
          %343 = sbr.rel (%p341) target = $region48
        $region47: #{tpu_custom_call.1} parent=39 // pred_region
          %s344 = sand.u32 %s25, 1
          %s345 = scalar_lea.sflag [#allocation6], %s344
          %s346 = sand.u32 %s61, 1
          %s347 = smul.addr %s346, 32
          %s348 = scalar_lea.vmem [#allocation5], %s347
          %s350 = ssub.s32 512, 512
          %351 = vsyncadd %s345, %s350
          %s352 = smul.addr %s25, 4
          %s353 = smul.addr %s352, 128
          %s354 = scalar_lea.hbm %s1, %s353
          %s355 = sshll.u32 %s348, 4
          %s356 = int_to_ptr.vmem [resolvable:$true] %s355
          %361 = dma.hbm_to_vmem [thread:$0]  %s354, 512, %s356, %s345, 128, 128, 8
        $region48: #{tpu_custom_call.1} parent=39 // pred_fallthru
          _
        // Predicated region
        $region49: #{tpu_custom_call.1} parent=39 // pred_check
          %p362 = pneg %p97
        $region50: #{tpu_custom_call.1} parent=39 // pred_check_branch
          %364 = sbr.rel (%p362) target = $region52
        $region51: #{tpu_custom_call.1} parent=39 // pred_region
          %p365 = scmp.lt.s32.totalorder %s25, 1
          %s366 = scalar_select %p365, %s25, 1
          %s367 = scalar_lea.vmem %s2, %s366
        $region52: #{tpu_custom_call.1} parent=39 // pred_fallthru
          _
      $region40: #{tpu_custom_call.1} parent=5 // pred_fallthru
        _
      %p368 = scmp.le.s32.totalorder 1, %s25
      %p369 = scmp.lt.s32.totalorder %s25, 3
      %p370 = pnand %p368, %p369
      %p371 = pneg %p370
      // Predicated region
      $region53: #{tpu_custom_call.1} parent=5 // pred_check
        _
      $region54: #{tpu_custom_call.1} parent=5 // pred_check_branch
        %373 = sbr.rel (%p370) target = $region56
      $region55: #{tpu_custom_call.1} parent=5 // pred_region
        %s374 = ssub.s32 %s25, 1
        %s375 = sand.u32 %s38, 1
        %s376 = scalar_lea.sflag [#allocation3], %s375
        %s377 = sand.u32 %s38, 1
        %s378 = smul.addr %s377, 16
        %s379 = scalar_lea.vmem [#allocation2], %s378
        // Predicated region
        $region57: #{tpu_custom_call.1} parent=55 // pred_check
          %p380 = pneg %p51
        $region58: #{tpu_custom_call.1} parent=55 // pred_check_branch
          %382 = sbr.rel (%p380) target = $region60
        $region59: #{tpu_custom_call.1} parent=55 // pred_region
          %383 = dma.done %s376, 256
        $region60: #{tpu_custom_call.1} parent=55 // pred_fallthru
          _
        %s384 = sand.u32 %s30, 1
        %s385 = scalar_lea.sflag [#allocation6], %s384
        %s386 = sand.u32 %s64, 1
        %s387 = smul.addr %s386, 32
        %s388 = scalar_lea.vmem [#allocation5], %s387
        // Predicated region
        $region61: #{tpu_custom_call.1} parent=55 // pred_check
          %p389 = pneg %p77
        $region62: #{tpu_custom_call.1} parent=55 // pred_check_branch
          %391 = sbr.rel (%p389) target = $region64
        $region63: #{tpu_custom_call.1} parent=55 // pred_region
          %392 = dma.done %s385, 512
        $region64: #{tpu_custom_call.1} parent=55 // pred_fallthru
          _
        // Predicated region
        $region65: #{tpu_custom_call.1} parent=55 // pred_check
          %p393 = pneg %p124
        $region66: #{tpu_custom_call.1} parent=55 // pred_check_branch
          %395 = sbr.rel (%p393) target = $region68
        $region67: #{tpu_custom_call.1} parent=55 // pred_region
          %396 = dma.done [#allocation6], 256
        $region68: #{tpu_custom_call.1} parent=55 // pred_fallthru
          _
        // Predicated region
        $region69: #{tpu_custom_call.1} parent=55 // pred_check
          %p397 = pneg %p145
        $region70: #{tpu_custom_call.1} parent=55 // pred_check_branch
          %399 = sbr.rel (%p397) target = $region72
        $region71: #{tpu_custom_call.1} parent=55 // pred_region
          %400 = dma.done [#allocation9], 16
        $region72: #{tpu_custom_call.1} parent=55 // pred_fallthru
          _
        // Predicated region
        $region73: #{tpu_custom_call.1} parent=55 // pred_check
          %p401 = pneg %p208
        $region74: #{tpu_custom_call.1} parent=55 // pred_check_branch
          %403 = sbr.rel (%p401) target = $region76
        $region75: #{tpu_custom_call.1} parent=55 // pred_region
          %404 = dma.done [#allocation9], 256
        $region76: #{tpu_custom_call.1} parent=55 // pred_fallthru
          _
        %s405 = sand.u32 %s38, 1
        %s406 = scalar_lea.sflag [#allocation3], %s405
        %s407 = sand.u32 %s38, 1
        %s408 = smul.addr %s407, 16
        %s409 = scalar_lea.vmem [#allocation2], %s408
        %p410 = pneg %p51
        %p411 = pneg %p48
        %s412 = sand.u32 %s30, 1
        %s413 = scalar_lea.sflag [#allocation6], %s412
        %s414 = sand.u32 %s64, 1
        %s415 = smul.addr %s414, 32
        %s416 = scalar_lea.vmem [#allocation5], %s415
        %p417 = pneg %p77
        %p418 = pneg %p74
        %p419 = scmp.lt.s32.totalorder %s30, 1
        %s420 = scalar_select %p419, %s30, 1
        %s421 = scalar_lea.vmem %s2, %s420
        %p422 = pneg %p103
        %p423 = pneg %p100
        %p424 = pneg %p124
        %p425 = pneg %p121
        %p426 = pneg %p145
        %p427 = pneg %p142
        %p428 = pneg %p166
        %p429 = pneg %p163
        %p430 = pneg %p187
        %p431 = pneg %p184
        %p432 = pneg %p208
        %p433 = pneg %p205
        %p434 = pneg %p229
        %p435 = pneg %p226
        %p436 = pneg %p255
        %p437 = pneg %p252
        %s438 = sand.u32 %s242, 1
        %s439 = scalar_lea.sflag [#allocation4], %s438
        %s440 = sand.u32 %s242, 1
        %s441 = smul.addr %s440, 16
        %s442 = scalar_lea.vmem [#allocation11], %s441
        %p443 = scmp.lt.s32.totalorder %s30, 1
        %s444 = scalar_select %p443, %s30, 1
        %s445 = scalar_lea.vmem %s2, %s444
        %v447 = vld [vmem:[%s379] sm:$0xff]
        %v448 = vld [vmem:[%s379 + $0x8] sm:$0xff]
        %v449 = vpack.c.bf16 %v448, %v447
        %v450 = vld [vmem:[%s388] sm:$0xff]
        %v451 = vld [vmem:[%s388 + $0x8] sm:$0xff]
        %v452 = vld [vmem:[%s388 + $0x10] sm:$0xff]
        %v453 = vld [vmem:[%s388 + $0x18] sm:$0xff]
        %v454 = vpack.c.bf16 %v451, %v450
        %v455 = vpack.c.bf16 %v453, %v452
        %v456 = vld [vmem:[#allocation7] sm:$0xf]
        %v457 = vld [vmem:[#allocation7 + $0x4] sm:$0xf]
        %v458 = vld [vmem:[#allocation7 + $0x8] sm:$0xf]
        %v459 = vld [vmem:[#allocation7 + $0xc] sm:$0xf]
        %v460 = vld [vmem:[#allocation8] sm:$0x1]
        %v462 = vlaneseq
        %v463 = vshrl.u32 %v462, 7
        %v464 = vsub.s32 0, %v463
        %v465 = vrot.slane %v460, %v464
        %v471 = vunpack.c.l.b16 %v456
        %v472 = vunpack.c.l.b16 %v457
        %v473 = vunpack.c.l.b16 %v458
        %v474 = vunpack.c.l.b16 %v459
        %v475 = vpack.c.b16 %v472, %v471
        %v476 = vpack.c.b16 %v474, %v473
        %vm479 = vcmask 261120
        %v481 = vsel %vm479, %v449, 0
        %483 = vmatprep.subr.bf16.mxu0 0
        %484 = vmatpush1.bf16.msra.mxu0 %v475
        %485 = vmatprep.subr.bf16.mxu0 0
        %486 = vmatpush1.bf16.msra.mxu0 %v476
        %487 = vmatprep.subr.bf16.mxu0 0
        %488 = vmatpush1.bf16.msra.mxu0 0
        %489 = vmatprep.subr.bf16.mxu0 0
        %490 = vmatpush1.bf16.msra.mxu0 0
        %491 = vmatprep.subr.bf16.mxu0 0
        %492 = vmatpush1.bf16.msra.mxu0 0
        %493 = vmatprep.subr.bf16.mxu0 0
        %494 = vmatpush1.bf16.msra.mxu0 0
        %495 = vmatprep.subr.bf16.mxu0 0
        %496 = vmatpush1.bf16.msra.mxu0 0
        %497 = vmatprep.subr.bf16.mxu0 0
        %498 = vmatpush1.bf16.msra.mxu0 0
        %499 = vmatprep.subr.bf16.mxu0 0
        %500 = vmatpush1.bf16.msra.mxu0 0
        %501 = vmatprep.subr.bf16.mxu0 0
        %502 = vmatpush1.bf16.msra.mxu0 0
        %503 = vmatprep.subr.bf16.mxu0 0
        %504 = vmatpush1.bf16.msra.mxu0 0
        %505 = vmatprep.subr.bf16.mxu0 0
        %506 = vmatpush1.bf16.msra.mxu0 0
        %507 = vmatprep.subr.bf16.mxu0 0
        %508 = vmatpush1.bf16.msra.mxu0 0
        %509 = vmatprep.subr.bf16.mxu0 0
        %510 = vmatpush1.bf16.msra.mxu0 0
        %511 = vmatprep.subr.bf16.mxu0 0
        %512 = vmatpush1.bf16.msra.mxu0 0
        %513 = vmatprep.subr.bf16.mxu0 0
        %514 = vmatpush1.bf16.msra.mxu0 0
        %515 = vmatprep.mubr.bf16.mxu0 0
        %516 = vmatmul.mubr.bf16.gmra.mrb[0].mxu0 %v481
        %v517 = vpop.f32.mrb[0].mxu0
        %v518 = vadd.f32 %v465, %v517
        %v519 = vpop.f32.mrb[0].mxu0
        %v520 = vpop.f32.mrb[0].mxu0
        %v521 = vadd.f32 %v465, %v520
        %v522 = vpop.f32.mrb[0].mxu0
        %523 = vdwg.mxu0
        %v524 = vld [vmem:[%s5] sm:$0xf]
        %v525 = vld [vmem:[%s5 + $0x4] sm:$0xf]
        %v526 = vld [vmem:[%s5 + $0x8] sm:$0xf]
        %v527 = vld [vmem:[%s5 + $0xc] sm:$0xf]
        %v528 = vld [vmem:[%s6] sm:$0x1]
        %v530 = vlaneseq
        %v531 = vshrl.u32 %v530, 7
        %v532 = vsub.s32 0, %v531
        %v533 = vrot.slane %v528, %v532
        %v539 = vunpack.c.l.b16 %v524
        %v540 = vunpack.c.l.b16 %v525
        %v541 = vunpack.c.l.b16 %v526
        %v542 = vunpack.c.l.b16 %v527
        %v543 = vpack.c.b16 %v540, %v539
        %v544 = vpack.c.b16 %v542, %v541
        %v548 = vsel %vm479, %v454, 0
        %v551 = vsel %vm479, %v455, 0
        %553 = vmatprep.subr.bf16.mxu0 0
        %554 = vmatpush1.bf16.msra.mxu0 %v543
        %555 = vmatprep.subr.bf16.mxu0 0
        %556 = vmatpush1.bf16.msra.mxu0 %v544
        %557 = vmatprep.subr.bf16.mxu0 0
        %558 = vmatpush1.bf16.msra.mxu0 0
        %559 = vmatprep.subr.bf16.mxu0 0
        %560 = vmatpush1.bf16.msra.mxu0 0
        %561 = vmatprep.subr.bf16.mxu0 0
        %562 = vmatpush1.bf16.msra.mxu0 0
        %563 = vmatprep.subr.bf16.mxu0 0
        %564 = vmatpush1.bf16.msra.mxu0 0
        %565 = vmatprep.subr.bf16.mxu0 0
        %566 = vmatpush1.bf16.msra.mxu0 0
        %567 = vmatprep.subr.bf16.mxu0 0
        %568 = vmatpush1.bf16.msra.mxu0 0
        %569 = vmatprep.subr.bf16.mxu0 0
        %570 = vmatpush1.bf16.msra.mxu0 0
        %571 = vmatprep.subr.bf16.mxu0 0
        %572 = vmatpush1.bf16.msra.mxu0 0
        %573 = vmatprep.subr.bf16.mxu0 0
        %574 = vmatpush1.bf16.msra.mxu0 0
        %575 = vmatprep.subr.bf16.mxu0 0
        %576 = vmatpush1.bf16.msra.mxu0 0
        %577 = vmatprep.subr.bf16.mxu0 0
        %578 = vmatpush1.bf16.msra.mxu0 0
        %579 = vmatprep.subr.bf16.mxu0 0
        %580 = vmatpush1.bf16.msra.mxu0 0
        %581 = vmatprep.subr.bf16.mxu0 0
        %582 = vmatpush1.bf16.msra.mxu0 0
        %583 = vmatprep.subr.bf16.mxu0 0
        %584 = vmatpush1.bf16.msra.mxu0 0
        %585 = vmatprep.mubr.bf16.mxu0 0
        %586 = vmatmul.mubr.bf16.gmra.mrb[0].mxu0 %v548
        %v587 = vpop.f32.mrb[0].mxu0
        %v588 = vadd.f32 %v533, %v587
        %v589 = vpop.f32.mrb[0].mxu0
        %v590 = vpop.f32.mrb[0].mxu0
        %v591 = vadd.f32 %v533, %v590
        %v592 = vpop.f32.mrb[0].mxu0
        %593 = vmatprep.mubr.bf16.mxu0 0
        %594 = vmatmul.mubr.bf16.gmra.mrb[0].mxu0 %v551
        %v595 = vpop.f32.mrb[0].mxu0
        %v596 = vadd.f32 %v533, %v595
        %v597 = vpop.f32.mrb[0].mxu0
        %v598 = vpop.f32.mrb[0].mxu0
        %v599 = vadd.f32 %v533, %v598
        %v600 = vpop.f32.mrb[0].mxu0
        %601 = vdwg.mxu0
        %v602 = vld [vmem:[#allocation10] sm:$0xf]
        %v603 = vld [vmem:[#allocation10 + $0x4] sm:$0xf]
        %v604 = vld [vmem:[#allocation10 + $0x8] sm:$0xf]
        %v605 = vld [vmem:[#allocation10 + $0xc] sm:$0xf]
        %v606 = vld [vmem:[%s8] sm:$0x1]
        %v608 = vlaneseq
        %v609 = vshrl.u32 %v608, 7
        %v610 = vsub.s32 0, %v609
        %v611 = vrot.slane %v606, %v610
        %v617 = vunpack.c.l.b16 %v602
        %v618 = vunpack.c.l.b16 %v603
        %v619 = vunpack.c.l.b16 %v604
        %v620 = vunpack.c.l.b16 %v605
        %v621 = vpack.c.b16 %v618, %v617
        %v622 = vpack.c.b16 %v620, %v619
        %625 = vmatprep.subr.bf16.mxu0 0
        %626 = vmatpush1.bf16.msra.mxu0 %v621
        %627 = vmatprep.subr.bf16.mxu0 0
        %628 = vmatpush1.bf16.msra.mxu0 %v622
        %629 = vmatprep.subr.bf16.mxu0 0
        %630 = vmatpush1.bf16.msra.mxu0 0
        %631 = vmatprep.subr.bf16.mxu0 0
        %632 = vmatpush1.bf16.msra.mxu0 0
        %633 = vmatprep.subr.bf16.mxu0 0
        %634 = vmatpush1.bf16.msra.mxu0 0
        %635 = vmatprep.subr.bf16.mxu0 0
        %636 = vmatpush1.bf16.msra.mxu0 0
        %637 = vmatprep.subr.bf16.mxu0 0
        %638 = vmatpush1.bf16.msra.mxu0 0
        %639 = vmatprep.subr.bf16.mxu0 0
        %640 = vmatpush1.bf16.msra.mxu0 0
        %641 = vmatprep.subr.bf16.mxu0 0
        %642 = vmatpush1.bf16.msra.mxu0 0
        %643 = vmatprep.subr.bf16.mxu0 0
        %644 = vmatpush1.bf16.msra.mxu0 0
        %645 = vmatprep.subr.bf16.mxu0 0
        %646 = vmatpush1.bf16.msra.mxu0 0
        %647 = vmatprep.subr.bf16.mxu0 0
        %648 = vmatpush1.bf16.msra.mxu0 0
        %649 = vmatprep.subr.bf16.mxu0 0
        %650 = vmatpush1.bf16.msra.mxu0 0
        %651 = vmatprep.subr.bf16.mxu0 0
        %652 = vmatpush1.bf16.msra.mxu0 0
        %653 = vmatprep.subr.bf16.mxu0 0
        %654 = vmatpush1.bf16.msra.mxu0 0
        %655 = vmatprep.subr.bf16.mxu0 0
        %656 = vmatpush1.bf16.msra.mxu0 0
        %657 = vmatprep.mubr.bf16.mxu0 0
        %658 = vmatmul.mubr.bf16.gmra.mrb[0].mxu0 %v548
        %v659 = vpop.f32.mrb[0].mxu0
        %v660 = vadd.f32 %v611, %v659
        %v661 = vpop.f32.mrb[0].mxu0
        %v662 = vpop.f32.mrb[0].mxu0
        %v663 = vadd.f32 %v611, %v662
        %v664 = vpop.f32.mrb[0].mxu0
        %665 = vmatprep.mubr.bf16.mxu0 0
        %666 = vmatmul.mubr.bf16.gmra.mrb[0].mxu0 %v551
        %v667 = vpop.f32.mrb[0].mxu0
        %v668 = vadd.f32 %v611, %v667
        %v669 = vpop.f32.mrb[0].mxu0
        %v670 = vpop.f32.mrb[0].mxu0
        %v671 = vadd.f32 %v611, %v670
        %v672 = vpop.f32.mrb[0].mxu0
        %673 = vdwg.mxu0
        %v674 = vld [vmem:[%s445] sm:$0x1]
        %v675 = vmul.f32 %v674, -1e+15
        %v676 = vpack.c.bf16 %v521, %v518
        %v677 = vpack.c.bf16 %v591, %v588
        %v678 = vpack.c.bf16 %v599, %v596
        %v679 = vpack.c.bf16 %v663, %v660
        %v680 = vpack.c.bf16 %v671, %v668
        %681 = vmatprep.subr.bf16.mxu0 0
        %682 = vmatpush1.bf16.xpose.msra.mxu0 %v677
        %683 = vmatprep.subr.bf16.mxu0 0
        %684 = vmatpush1.bf16.xpose.msra.mxu0 %v678
        %685 = vmatprep.subr.bf16.mxu0 0
        %686 = vmatpush1.bf16.xpose.msra.mxu0 0
        %687 = vmatprep.subr.bf16.mxu0 0
        %688 = vmatpush1.bf16.xpose.msra.mxu0 0
        %689 = vmatprep.subr.bf16.mxu0 0
        %690 = vmatpush1.bf16.xpose.msra.mxu0 0
        %691 = vmatprep.subr.bf16.mxu0 0
        %692 = vmatpush1.bf16.xpose.msra.mxu0 0
        %693 = vmatprep.subr.bf16.mxu0 0
        %694 = vmatpush1.bf16.xpose.msra.mxu0 0
        %695 = vmatprep.subr.bf16.mxu0 0
        %696 = vmatpush1.bf16.xpose.msra.mxu0 0
        %697 = vmatprep.subr.bf16.mxu0 0
        %698 = vmatpush1.bf16.xpose.msra.mxu0 0
        %699 = vmatprep.subr.bf16.mxu0 0
        %700 = vmatpush1.bf16.xpose.msra.mxu0 0
        %701 = vmatprep.subr.bf16.mxu0 0
        %702 = vmatpush1.bf16.xpose.msra.mxu0 0
        %703 = vmatprep.subr.bf16.mxu0 0
        %704 = vmatpush1.bf16.xpose.msra.mxu0 0
        %705 = vmatprep.subr.bf16.mxu0 0
        %706 = vmatpush1.bf16.xpose.msra.mxu0 0
        %707 = vmatprep.subr.bf16.mxu0 0
        %708 = vmatpush1.bf16.xpose.msra.mxu0 0
        %709 = vmatprep.subr.bf16.mxu0 0
        %710 = vmatpush1.bf16.xpose.msra.mxu0 0
        %711 = vmatprep.subr.bf16.mxu0 0
        %712 = vmatpush1.bf16.xpose.msra.mxu0 0
        %713 = vmatprep.mubr.bf16.mxu0 0
        %714 = vmatmul.mubr.bf16.gmra.mrb[0].mxu0 %v676
        %v715 = vpop.f32.mrb[0].mxu0
        %v716 = vadd.f32 0.0, %v715
        %v717 = vpop.f32.mrb[0].mxu0
        %v718 = vpop.f32.mrb[0].mxu0
        %v719 = vadd.f32 0.0, %v718
        %v720 = vpop.f32.mrb[0].mxu0
        %721 = vdwg.mxu0
        %v722 = vmul.f32 %v716, 0.088388346
        %v723 = vmul.f32 %v719, 0.088388346
        %v725 = vlaneseq
        %v726 = vshrl.u32 %v725, 7
        %v727 = vsub.s32 0, %v726
        %v728 = vrot.slane %v675, %v727
        %v730 = vadd.f32 %v722, %v728
        %v731 = vadd.f32 %v723, %v728
        %v732 = vsel %vm479, %v730, -inf
        %733 = vmax.xlane.f32.xlu0 %v732
        %v734 = vpop.xlane.xlu0 %733
        %v735 = vsel %vm479, %v731, -inf
        %736 = vmax.xlane.f32.xlu0 %v735
        %v737 = vpop.xlane.xlu0 %736
        %v738 = vsub.f32 %v730, %v734
        %v739 = vsub.f32 %v731, %v737
        %v740 = vmul.f32 %v738, 1.442695
        %v741 = vpow.pop %v740
        %v742 = vmul.f32 %v739, 1.442695
        %v743 = vpow.pop %v742
        %v744 = vsel %vm479, %v741, 0.0
        %745 = vadd.xlane.f32.xlu0 %v744
        %v746 = vpop.xlane.xlu0 %745
        %v747 = vsel %vm479, %v743, 0.0
        %748 = vadd.xlane.f32.xlu0 %v747
        %v749 = vpop.xlane.xlu0 %748
        %v750 = vrcp.pop %v746
        %v751 = vrcp.pop %v749
        %v752 = vmul.f32 %v741, %v750
        %v753 = vmul.f32 %v743, %v751
        %v754 = vpack.c.bf16 %v753, %v752
        %v756 = vsel %vm479, %v754, 0
        %758 = vmatprep.subr.bf16.mxu0 0
        %759 = vmatpush1.bf16.msra.mxu0 %v679
        %760 = vmatprep.subr.bf16.mxu0 0
        %761 = vmatpush1.bf16.msra.mxu0 %v680
        %762 = vmatprep.subr.bf16.mxu0 0
        %763 = vmatpush1.bf16.msra.mxu0 0
        %764 = vmatprep.subr.bf16.mxu0 0
        %765 = vmatpush1.bf16.msra.mxu0 0
        %766 = vmatprep.subr.bf16.mxu0 0
        %767 = vmatpush1.bf16.msra.mxu0 0
        %768 = vmatprep.subr.bf16.mxu0 0
        %769 = vmatpush1.bf16.msra.mxu0 0
        %770 = vmatprep.subr.bf16.mxu0 0
        %771 = vmatpush1.bf16.msra.mxu0 0
        %772 = vmatprep.subr.bf16.mxu0 0
        %773 = vmatpush1.bf16.msra.mxu0 0
        %774 = vmatprep.subr.bf16.mxu0 0
        %775 = vmatpush1.bf16.msra.mxu0 0
        %776 = vmatprep.subr.bf16.mxu0 0
        %777 = vmatpush1.bf16.msra.mxu0 0
        %778 = vmatprep.subr.bf16.mxu0 0
        %779 = vmatpush1.bf16.msra.mxu0 0
        %780 = vmatprep.subr.bf16.mxu0 0
        %781 = vmatpush1.bf16.msra.mxu0 0
        %782 = vmatprep.subr.bf16.mxu0 0
        %783 = vmatpush1.bf16.msra.mxu0 0
        %784 = vmatprep.subr.bf16.mxu0 0
        %785 = vmatpush1.bf16.msra.mxu0 0
        %786 = vmatprep.subr.bf16.mxu0 0
        %787 = vmatpush1.bf16.msra.mxu0 0
        %788 = vmatprep.subr.bf16.mxu0 0
        %789 = vmatpush1.bf16.msra.mxu0 0
        %790 = vmatprep.mubr.bf16.mxu0 0
        %791 = vmatmul.mubr.bf16.gmra.mrb[0].mxu0 %v756
        %v792 = vpop.f32.mrb[0].mxu0
        %v793 = vadd.f32 0.0, %v792
        %v794 = vpop.f32.mrb[0].mxu0
        %v795 = vpop.f32.mrb[0].mxu0
        %v796 = vadd.f32 0.0, %v795
        %v797 = vpop.f32.mrb[0].mxu0
        %798 = vdwg.mxu0
        %799 = vst [vmem:[%s442] sm:$0xff] %v793
        %800 = vst [vmem:[%s442 + $0x8] sm:$0xff] %v796
        %s801 = sand.u32 %s242, 1
        %s802 = scalar_lea.sflag [#allocation4], %s801
        %s803 = sand.u32 %s242, 1
        %s804 = smul.addr %s803, 16
        %s805 = scalar_lea.vmem [#allocation11], %s804
        // Predicated region
        $region77: #{tpu_custom_call.1} parent=55 // pred_check
          %p806 = pneg %p252
        $region78: #{tpu_custom_call.1} parent=55 // pred_check_branch
          %808 = sbr.rel (%p806) target = $region80
        $region79: #{tpu_custom_call.1} parent=55 // pred_region
          %s810 = ssub.s32 256, 256
          %811 = vsyncadd %s802, %s810
          %s812 = smul.addr %s30, 2
          %s813 = smul.addr %s812, 128
          %s814 = scalar_lea.hbm %s9, %s813
          %s815 = sshll.u32 %s805, 4
          %s816 = int_to_ptr.vmem [resolvable:$true] %s815
          %821 = dma.vmem_to_hbm [thread:$0]  %s816, 256, %s814, %s802, 128, 128, 8
        $region80: #{tpu_custom_call.1} parent=55 // pred_fallthru
          _
      $region56: #{tpu_custom_call.1} parent=5 // pred_fallthru
        _
      %p822 = scmp.le.s32.totalorder 2, %s25
      // Predicated region
      $region81: #{tpu_custom_call.1} parent=5 // pred_check
        %p823 = pneg %p822
      $region82: #{tpu_custom_call.1} parent=5 // pred_check_branch
        %825 = sbr.rel (%p823) target = $region84
      $region83: #{tpu_custom_call.1} parent=5 // pred_region
        %s826 = ssub.s32 %s25, 2
        // Predicated region
        $region85: #{tpu_custom_call.1} parent=83 // pred_check
          %p827 = pneg %p258
        $region86: #{tpu_custom_call.1} parent=83 // pred_check_branch
          %829 = sbr.rel (%p827) target = $region88
        $region87: #{tpu_custom_call.1} parent=83 // pred_region
          %s830 = sand.u32 %s243, 1
          %s831 = scalar_lea.sflag [#allocation4], %s830
          %s832 = sand.u32 %s243, 1
          %s833 = smul.addr %s832, 16
          %s834 = scalar_lea.vmem [#allocation11], %s833
          %835 = dma.done %s831, 256
        $region88: #{tpu_custom_call.1} parent=83 // pred_fallthru
          _
      $region84: #{tpu_custom_call.1} parent=5 // pred_fallthru
        _
    $region6: #{tpu_custom_call.1} parent=1 // loop_footer
      %s29 = sadd.s32 1, %s25
    $region7: #{tpu_custom_call.1} parent=1 // loop_footer_branch
      %24 = sbr.rel target = $region3
    $region8: #{tpu_custom_call.1} parent=1 // loop_exit
      _
    %836 = vsyncpa [#allocation3], 1
    %s837 = scalar_lea.sflag [#allocation3], 1
    %838 = vsyncpa %s837, 1
    %839 = vsyncpa [#allocation6], 1
    %s840 = scalar_lea.sflag [#allocation6], 1
    %841 = vsyncpa %s840, 1
    %842 = vsyncpa [#allocation9], 1
    %843 = vsyncpa [#allocation4], 1
    %s844 = scalar_lea.sflag [#allocation4], 1
    %845 = vsyncpa %s844, 1

</llo_original>
